<compile_context>
chip_gen: v6e
topology: v6e:2x2x1
jax: 0.10.0
libtpu: 0.0.40
codegen_flags: <defaults>
</compile_context>

<pallas_src>
import jax
import jax.numpy as jnp
from jax import lax
from jax.experimental import pallas as pl
from jax.experimental.pallas import tpu as pltpu


def _proj_t_kernel(x_ref, w_ref, b_ref, o_ref):
    # x_ref: (tm, K) bf16, w_ref: (N, K) bf16, b_ref: (N, 1) f32, o_ref: (N, tm) f32
    acc = lax.dot_general(
        w_ref[...], x_ref[...],
        dimension_numbers=(((1,), (1,)), ((), ())),
        preferred_element_type=jnp.float32)              # (N, tm)
    # bias is (N, 1): a per-sublane constant add, broadcast along the lane axis.
    o_ref[...] = (acc + b_ref[...]).astype(o_ref.dtype)


def pallas_linear_t(x2d, w, b, *, tm=1024, compute_dtype=jnp.bfloat16,
                    out_dtype=jnp.float32):
    """x2d: (M, K); w: (N, K) torch-style; b: (N,).  Returns (N, M) = w @ x^T + b."""
    M, K = x2d.shape
    N = w.shape[0]

    # Row tile: large for roofline, multiple of 128 so it can serve as the lane
    # axis of the transposed output.  Shrink for small inputs instead of
    # over-padding tiny problems up to 1024 rows.
    tm = min(tm, pl.cdiv(M, 128) * 128)
    m_pad = pl.cdiv(M, tm) * tm
    if m_pad != M:
        x2d = jnp.pad(x2d, ((0, m_pad - M), (0, 0)))
    grid_m = m_pad // tm

    x2d = x2d.astype(compute_dtype)
    w = w.astype(compute_dtype)
    b2d = b.astype(jnp.float32).reshape(N, 1)

    in_item = jnp.dtype(compute_dtype).itemsize
    out_item = jnp.dtype(out_dtype).itemsize
    cost = pl.CostEstimate(
        flops=2 * m_pad * K * N,
        transcendentals=0,
        bytes_accessed=in_item * (m_pad * K + N * K) + out_item * N * m_pad,
    )

    out = pl.pallas_call(
        _proj_t_kernel,
        out_shape=jax.ShapeDtypeStruct((N, m_pad), out_dtype),
        grid_spec=pltpu.PrefetchScalarGridSpec(
            num_scalar_prefetch=0,
            grid=(grid_m,),
            in_specs=[
                pl.BlockSpec((tm, K), lambda i: (i, 0)),   # streamed row tiles
                pl.BlockSpec((N, K), lambda i: (0, 0)),    # resident weight
                pl.BlockSpec((N, 1), lambda i: (0, 0)),    # resident bias
            ],
            out_specs=pl.BlockSpec((N, tm), lambda i: (0, i)),  # lane-dense
        ),
        compiler_params=pltpu.CompilerParams(
            dimension_semantics=("parallel",)),  # lets v7x shard rows over 2 TCs
        cost_estimate=cost,
    )(x2d, w, b2d)
    return out[:, :M]


def to_image_forward(x, weight, bias, scale_factor, out_channels):
    """x: (B, H, W, C_in). weight: (out_features, C_in) torch-style. Returns NCHW."""
    B, H, W, C_in = x.shape
    M = B * H * W
    x2d = x.reshape(M, C_in)
    y = pallas_linear_t(x2d, weight, bias)                # (out_features, M), f32

    r = scale_factor
    if r > 1:
        C = out_channels
        # Fused NCHW permute + pixel_shuffle: one transpose pass.
        # (C*r*r, B*H*W) -> (C, r, r, B, H, W) -> (B, C, H, r, W, r) -> (B, C, H*r, W*r)
        y = y.reshape(C, r, r, B, H, W)
        y = jnp.transpose(y, (3, 0, 4, 1, 5, 2))
        y = y.reshape(B, C, H * r, W * r)
    else:
        y = y.reshape(out_channels, B, H, W)
        y = jnp.transpose(y, (1, 0, 2, 3))                # (B, C, H, W)
    return y


def init_to_image_params(key, in_channels, out_channels, scale_factor):
    assert scale_factor in {1, 2, 4}
    if scale_factor == 1:
        out_features = out_channels
    else:
        out_features = out_channels * scale_factor * scale_factor
    # xavier_uniform_ on weight of shape (out_features, in_channels)
    bound = (6.0 / (in_channels + out_features)) ** 0.5
    weight = jax.random.uniform(
        key, (out_features, in_channels), dtype=jnp.float32,
        minval=-bound, maxval=bound)
    bias = jnp.zeros((out_features,), dtype=jnp.float32)
    return weight, bias


def _pixel_shuffle_ref(x, r):
    # x: (B, C*r*r, H, W) -> (B, C, H*r, W*r), matching F.pixel_shuffle
    B, Cr2, H, W = x.shape
    C = Cr2 // (r * r)
    x = x.reshape(B, C, r, r, H, W)
    x = x.transpose(0, 1, 4, 2, 5, 3)
    return x.reshape(B, C, H * r, W * r)


if __name__ == "__main__":
    key = jax.random.PRNGKey(0)
    k_x, k_w = jax.random.split(key)

    # Small shapes consistent with the module: Linear over the channel dim of a
    # (B, H, W, C) tensor, then NCHW permute + pixel_shuffle.
    B, H, W, C_in = 2, 8, 8, 32
    out_channels, scale_factor = 3, 2

    x = jax.random.normal(k_x, (B, H, W, C_in), dtype=jnp.float32)
    weight, bias = init_to_image_params(k_w, C_in, out_channels, scale_factor)

    out = to_image_forward(x, weight, bias, scale_factor, out_channels)
    out = jax.block_until_ready(out)
    assert out.shape == (B, out_channels, H * scale_factor, W * scale_factor)

    # Reference 1: same math with bf16-rounded inputs (matches kernel compute
    # path: bf16 operands, f32 accumulate) -> tight tolerance.
    xb = x.astype(jnp.bfloat16).astype(jnp.float32)
    wb = weight.astype(jnp.bfloat16).astype(jnp.float32)
    ref_b = xb.reshape(-1, C_in) @ wb.T + bias
    ref_b = ref_b.reshape(B, H, W, -1).transpose(0, 3, 1, 2)
    if scale_factor > 1:
        ref_b = _pixel_shuffle_ref(ref_b, scale_factor)
    assert jnp.allclose(out, ref_b, atol=1e-4, rtol=1e-4)

    # Reference 2: full-f32 module semantics -> loose tolerance (bf16 inputs).
    ref_f = x.reshape(-1, C_in) @ weight.T + bias
    ref_f = ref_f.reshape(B, H, W, -1).transpose(0, 3, 1, 2)
    if scale_factor > 1:
        ref_f = _pixel_shuffle_ref(ref_f, scale_factor)
    assert jnp.allclose(out, ref_f, atol=5e-2, rtol=5e-2)

    print("KERNEL_OK")
</pallas_src>

<mosaic_0001>
module attributes {stable_mosaic.version = 11 : i64} {
  func.func @_proj_t_kernel(%arg0: i32, %arg1: memref<128x32xbf16, #tpu.memory_space<vmem>>, %arg2: memref<12x32xbf16, #tpu.memory_space<vmem>>, %arg3: memref<12x1xf32, #tpu.memory_space<vmem>>, %arg4: memref<12x128xf32, #tpu.memory_space<vmem>>) attributes {dimension_semantics = [#tpu.dimension_semantics<parallel>], iteration_bounds = array<i64: 1>, scalar_prefetch = 0 : i64, scratch_operands = 0 : i64, tpu.core_type = #tpu.core_type<tc>, window_params = [{transform_indices = @transform_0, window_bounds = array<i64: 128, 32>}, {pipeline_mode = #tpu.pipeline_mode<synchronous>, transform_indices = @transform_1, window_bounds = array<i64: 12, 32>}, {pipeline_mode = #tpu.pipeline_mode<synchronous>, transform_indices = @transform_2, window_bounds = array<i64: 12, 1>}, {transform_indices = @transform_3, window_bounds = array<i64: 12, 128>}]} {
    %c0 = arith.constant 0 : index
    %c0_0 = arith.constant 0 : index
    %0 = vector.load %arg2[%c0, %c0_0] : memref<12x32xbf16, #tpu.memory_space<vmem>>, vector<12x32xbf16>
    %c0_1 = arith.constant 0 : index
    %c0_2 = arith.constant 0 : index
    %1 = vector.load %arg1[%c0_1, %c0_2] : memref<128x32xbf16, #tpu.memory_space<vmem>>, vector<128x32xbf16>
    %cst = arith.constant dense<0.000000e+00> : vector<12x128xf32>
    %2 = tpu.matmul %0, %1, %cst {dimension_numbers = #tpu.dot_dimension_numbers<[1], [1], [0], [0], [0, 0, 1, 0], [], []>} : vector<12x32xbf16>, vector<128x32xbf16>, vector<12x128xf32> -> vector<12x128xf32>
    %c0_3 = arith.constant 0 : index
    %c0_4 = arith.constant 0 : index
    %3 = vector.load %arg3[%c0_3, %c0_4] : memref<12x1xf32, #tpu.memory_space<vmem>>, vector<12x1xf32>
    %4 = vector.broadcast %3 : vector<12x1xf32> to vector<12x128xf32>
    %5 = arith.addf %2, %4 : vector<12x128xf32>
    %c0_5 = arith.constant 0 : index
    %c0_6 = arith.constant 0 : index
    %6 = vector.load %arg4[%c0_5, %c0_6] : memref<12x128xf32, #tpu.memory_space<vmem>>, vector<12x128xf32>
    tpu.vector_store %arg4[%c0_5, %c0_6], %5 {strides = array<i32>} : memref<12x128xf32, #tpu.memory_space<vmem>>, vector<12x128xf32>,
    return
  }
  func.func @transform_0(%arg0: i32) -> (i32, i32) {
    %c0_i32 = arith.constant 0 : i32
    %c0_i32_0 = arith.constant 0 : i32
    return %arg0, %c0_i32 : i32, i32
  }
  func.func @transform_1(%arg0: i32) -> (i32, i32) {
    %c0_i32 = arith.constant 0 : i32
    %c0_i32_0 = arith.constant 0 : i32
    %c0_i32_1 = arith.constant 0 : i32
    return %c0_i32, %c0_i32_0 : i32, i32
  }
  func.func @transform_2(%arg0: i32) -> (i32, i32) {
    %c0_i32 = arith.constant 0 : i32
    %c0_i32_0 = arith.constant 0 : i32
    %c0_i32_1 = arith.constant 0 : i32
    return %c0_i32, %c0_i32_0 : i32, i32
  }
  func.func @transform_3(%arg0: i32) -> (i32, i32) {
    %c0_i32 = arith.constant 0 : i32
    %c0_i32_0 = arith.constant 0 : i32
    return %c0_i32, %arg0 : i32, i32
  }
}

</mosaic_0001>

<llo_original>
// kernel: tpu_custom_call.1
$region0: #{tpu_custom_call.1}
  #allocation0 [shape = 'u32[]', space=smem, size = 0x4, offset = 0x4, fixed_abs, tag = 'smem constant byte address 0x4 - core index']
  #allocation1 [shape = 'u32[144,128]{1,0:T(1,128)}', space=vmem, size = 0x12000, scoped, tag = 'internal scratch']
  %s0 = inlined_call_operand.vmem [shape: bf16[128,32], index: 0, kind: input, shape index: {}]
  %s1 = inlined_call_operand.vmem [shape: bf16[12,32], index: 1, kind: input, shape index: {}]
  %s2 = inlined_call_operand.vmem [shape: f32[12,1], index: 2, kind: input, shape index: {}]
  %s3 = inlined_call_operand.hbm [shape: f32[12,128], index: 3, kind: output, shape index: {}]
  %s4 = sld [smem:[#allocation0]]
  $region22: #{tpu_custom_call.1} parent=0
    _
  %s6 = ssub.s32 1, %s4
  %s7 = scalar_select 0, %s6, %s4
  $region1: #{tpu_custom_call.1} parent=0
    #allocation2 [shape = 'u8[8192]{0}', space=vmem, size = 0x2000, scoped, tag = 'output window, operand 0, single buffered']
    #allocation3 [shape = 's32[1]{0}', space=sflag, size = 0x4, scoped, tag = 'scoped memory for tpu_custom_call.1']
    %8 = vsyncpa [#allocation3], 0
    // Predicated region
    $region2: #{tpu_custom_call.1} parent=1 // pred_check
      _
    $region3: #{tpu_custom_call.1} parent=1 // pred_check_branch
      %10 = sbr.rel (0) target = $region5
    $region4: #{tpu_custom_call.1} parent=1 // pred_region
      _
    $region5: #{tpu_custom_call.1} parent=1 // pred_fallthru
      _
    // Predicated region
    $region6: #{tpu_custom_call.1} parent=1 // pred_check
      _
    $region7: #{tpu_custom_call.1} parent=1 // pred_check_branch
      %12 = sbr.rel (0) target = $region9
    $region8: #{tpu_custom_call.1} parent=1 // pred_region
      _
    $region9: #{tpu_custom_call.1} parent=1 // pred_fallthru
      _
    // Predicated region
    $region10: #{tpu_custom_call.1} parent=1 // pred_check
      _
    $region11: #{tpu_custom_call.1} parent=1 // pred_check_branch
      %14 = sbr.rel (0) target = $region13
    $region12: #{tpu_custom_call.1} parent=1 // pred_region
      _
    $region13: #{tpu_custom_call.1} parent=1 // pred_fallthru
      _
    %v16 = vld [vmem:[%s1] sm:$0xf]
    %v17 = vld [vmem:[%s1 + $0x4] sm:$0x3]
    %v18 = vld [vmem:[%s0] sm:$0xf]
    %v19 = vld [vmem:[%s0 + $0x4] sm:$0xf]
    %v20 = vld [vmem:[%s0 + $0x8] sm:$0xf]
    %v21 = vld [vmem:[%s0 + $0xc] sm:$0xf]
    %v22 = vld [vmem:[%s0 + $0x10] sm:$0xf]
    %v23 = vld [vmem:[%s0 + $0x14] sm:$0xf]
    %v24 = vld [vmem:[%s0 + $0x18] sm:$0xf]
    %v25 = vld [vmem:[%s0 + $0x1c] sm:$0xf]
    %v26 = vld [vmem:[%s0 + $0x20] sm:$0xf]
    %v27 = vld [vmem:[%s0 + $0x24] sm:$0xf]
    %v28 = vld [vmem:[%s0 + $0x28] sm:$0xf]
    %v29 = vld [vmem:[%s0 + $0x2c] sm:$0xf]
    %v30 = vld [vmem:[%s0 + $0x30] sm:$0xf]
    %v31 = vld [vmem:[%s0 + $0x34] sm:$0xf]
    %v32 = vld [vmem:[%s0 + $0x38] sm:$0xf]
    %v33 = vld [vmem:[%s0 + $0x3c] sm:$0xf]
    %v34 = vld [vmem:[%s2] sm:$0xff]
    %v35 = vld [vmem:[%s2 + $0x8] sm:$0xf]
    %37 = vset.pattern.permute.xlu0 0
    %38 = vperm.xlu0 %37, %v34
    %v39 = vpop.permute.xlu0 %38
    %42 = vset.pattern.permute.xlu0 0
    %43 = vperm.xlu0 %42, %v35
    %v44 = vpop.permute.xlu0 %43
    %v48 = vunpack.c.l.b16 %v16
    %v49 = vunpack.c.l.b16 %v17
    %v50 = vpack.c.b16 %v49, %v48
    %v67 = vunpack.c.l.b16 %v18
    %v68 = vunpack.c.l.b16 %v19
    %v69 = vunpack.c.l.b16 %v20
    %v70 = vunpack.c.l.b16 %v21
    %v71 = vunpack.c.l.b16 %v22
    %v72 = vunpack.c.l.b16 %v23
    %v73 = vunpack.c.l.b16 %v24
    %v74 = vunpack.c.l.b16 %v25
    %v75 = vunpack.c.l.b16 %v26
    %v76 = vunpack.c.l.b16 %v27
    %v77 = vunpack.c.l.b16 %v28
    %v78 = vunpack.c.l.b16 %v29
    %v79 = vunpack.c.l.b16 %v30
    %v80 = vunpack.c.l.b16 %v31
    %v81 = vunpack.c.l.b16 %v32
    %v82 = vunpack.c.l.b16 %v33
    %v83 = vpack.c.b16 %v68, %v67
    %v84 = vpack.c.b16 %v70, %v69
    %v85 = vpack.c.b16 %v72, %v71
    %v86 = vpack.c.b16 %v74, %v73
    %v87 = vpack.c.b16 %v76, %v75
    %v88 = vpack.c.b16 %v78, %v77
    %v89 = vpack.c.b16 %v80, %v79
    %v90 = vpack.c.b16 %v82, %v81
    %vm91 = vcmask 261120
    %v93 = vsel %vm91, %v50, 0
    %v96 = vsel %vm91, %v83, 0
    %v99 = vsel %vm91, %v84, 0
    %v102 = vsel %vm91, %v85, 0
    %v105 = vsel %vm91, %v86, 0
    %v108 = vsel %vm91, %v87, 0
    %v111 = vsel %vm91, %v88, 0
    %v114 = vsel %vm91, %v89, 0
    %v117 = vsel %vm91, %v90, 0
    %119 = vmatprep.subr.bf16.mxu0 0
    %120 = vmatpush1.bf16.xpose.msra.mxu0 %v117
    %121 = vmatprep.subr.bf16.mxu0 0
    %122 = vmatpush1.bf16.xpose.msra.mxu0 %v114
    %123 = vmatprep.subr.bf16.mxu0 0
    %124 = vmatpush1.bf16.xpose.msra.mxu0 %v111
    %125 = vmatprep.subr.bf16.mxu0 0
    %126 = vmatpush1.bf16.xpose.msra.mxu0 %v108
    %127 = vmatprep.subr.bf16.mxu0 0
    %128 = vmatpush1.bf16.xpose.msra.mxu0 %v105
    %129 = vmatprep.subr.bf16.mxu0 0
    %130 = vmatpush1.bf16.xpose.msra.mxu0 %v102
    %131 = vmatprep.subr.bf16.mxu0 0
    %132 = vmatpush1.bf16.xpose.msra.mxu0 %v99
    %133 = vmatprep.subr.bf16.mxu0 0
    %134 = vmatpush1.bf16.xpose.msra.mxu0 %v96
    %135 = vmatprep.subr.bf16.mxu0 0
    %136 = vmatpush2.bf16.xpose.msra.mxu0 0
    %137 = vmatprep.subr.bf16.mxu0 0
    %138 = vmatpush2.bf16.xpose.msra.mxu0 0
    %139 = vmatprep.subr.bf16.mxu0 0
    %140 = vmatpush2.bf16.xpose.msra.mxu0 0
    %141 = vmatprep.subr.bf16.mxu0 0
    %142 = vmatpush2.bf16.xpose.msra.mxu0 0
    %143 = vmatprep.subr.bf16.mxu0 0
    %144 = vmatpush2.bf16.xpose.msra.mxu0 0
    %145 = vmatprep.subr.bf16.mxu0 0
    %146 = vmatpush2.bf16.xpose.msra.mxu0 0
    %147 = vmatprep.subr.bf16.mxu0 0
    %148 = vmatpush2.bf16.xpose.msra.mxu0 0
    %149 = vmatprep.subr.bf16.mxu0 0
    %150 = vmatpush2.bf16.xpose.msra.mxu0 0
    %151 = vmatprep.mubr.bf16.mxu0 0
    %152 = vmatmul.mubr.bf16.gmra.mxu0 %v93
    %v153 = vpop.f32.mrf.mxu0
    %v154 = vadd.f32 %v39, %v153
    %v155 = vpop.f32.mrf.mxu0
    %v156 = vpop.f32.mrf.mxu0
    %v157 = vadd.f32 %v44, %v156
    %v158 = vpop.f32.mrf.mxu0
    %159 = vdwg.mxu0
    %160 = vst [vmem:[#allocation2] sm:$0xff] %v154
    %161 = vst [vmem:[#allocation2 + $0x8] sm:$0xf] %v157
    // Predicated region
    $region14: #{tpu_custom_call.1} parent=1 // pred_check
      _
    $region15: #{tpu_custom_call.1} parent=1 // pred_check_branch
      %163 = sbr.rel (0) target = $region17
    $region16: #{tpu_custom_call.1} parent=1 // pred_region
      %s165 = ssub.s32 256, 256
      %166 = vsyncadd [#allocation3], %s165
      %s167 = sshll.u32 [#allocation2], 4
      %s168 = int_to_ptr.vmem [resolvable:$true] %s167
      %173 = dma.vmem_to_hbm [thread:$0]  %s168, 256, %s3, [#allocation3], 128, 128, 8
    $region17: #{tpu_custom_call.1} parent=1 // pred_fallthru
      _
    // Predicated region
    $region18: #{tpu_custom_call.1} parent=1 // pred_check
      _
    $region19: #{tpu_custom_call.1} parent=1 // pred_check_branch
      %175 = sbr.rel (0) target = $region21
    $region20: #{tpu_custom_call.1} parent=1 // pred_region
      %176 = dma.done [#allocation3], 256
    $region21: #{tpu_custom_call.1} parent=1 // pred_fallthru
      _
    %177 = vsyncpa [#allocation3], 1

</llo_original>
